<compile_context>
chip_gen: v5e
topology: v5e:2x2
jax: 0.10.0
libtpu: 0.0.40
codegen_flags: <defaults>
</compile_context>

<pallas_src>
import functools

import numpy as np

import jax
import jax.numpy as jnp
from jax import lax
from jax.experimental import pallas as pl
from jax.experimental.pallas import tpu as pltpu


def _att_rows(C):
    """Sublane-aligned row layout of the packed attention params."""
    r_ab1 = C                              # row with the first FC bias
    r_aw2 = ((C + 1 + 7) // 8) * 8         # 4 rows of aw2^T, aligned to a sublane tile
    r_ab2 = r_aw2 + 8                      # 4 rows holding ab2 in lane 0
    return r_ab1, r_aw2, r_ab2, r_ab2 + 4


# ----------------------------------------------------------------------------
# Fused Pallas kernel (one or more batch elements per grid step)
# ----------------------------------------------------------------------------
def _fused_lrd_kernel(x_ref, mask_ref, wkk_ref, wsep_ref, w11_ref, bias_ref,
                      att_ref, common_ref, spec_ref, *, K, pad, H, W):
    nb, C, HW = x_ref.shape
    r_ab1, r_aw2, r_ab2, _ = _att_rows(C)

    def taps(arr, offsets):
        """Shifted+masked copies of arr (C, HW) stacked into a (len(offsets)*C, HW) patch."""
        parts = []
        for dh, dw in offsets:
            d = dh * W + dw
            if d == 0:
                parts.append(arr)                       # center tap: mask is all-ones
                continue
            t = pltpu.roll(arr, shift=(-d) % HW, axis=1)  # t[c, p] = arr[c, p + d] (mod HW)
            mrow = (dh + pad) * K + (dw + pad)
            parts.append(t * mask_ref[mrow:mrow + 1, :])  # zero the wrapped border values
        return jnp.concatenate(parts, axis=0) if len(parts) > 1 else parts[0]

    kk_offs = [(dh, dw) for dh in range(-pad, pad + 1) for dw in range(-pad, pad + 1)]
    n1_offs = [(dh, 0) for dh in range(-pad, pad + 1)]
    w1_offs = [(0, dw) for dw in range(-pad, pad + 1)]

    for b in range(nb):
        x = x_ref[b]                                                  # (C, HW), f32, lane-dense

        # ---- attention: GAP -> FC -> ReLU -> FC -> hard-sigmoid -> 4 gates -----------
        # TODO(synk): `Attention` body not in the provided source; SE-style gating assumed.
        pooled = jnp.sum(x, axis=1, keepdims=True) * (1.0 / HW)       # (C, 1)
        h = jnp.sum(pooled * att_ref[0:C, :], axis=0, keepdims=True) \
            + att_ref[r_ab1:r_ab1 + 1, :]                             # (1, S)
        h = jnp.maximum(h, 0.0)
        z = jnp.sum(att_ref[r_aw2:r_aw2 + 4, :] * h, axis=1, keepdims=True) \
            + att_ref[r_ab2:r_ab2 + 4, 0:1]                           # (4, 1)
        y = jnp.clip(z + 3.0, 0.0, 6.0) * (1.0 / 6.0)                 # (4, 1) gates

        # ---- base convs: rolled/masked patch + ONE MXU matmul (common & specific) ----
        patch = taps(x, kk_offs).astype(jnp.bfloat16)                 # (K*K*C, HW)
        base = jnp.dot(wkk_ref[0:2 * C, :], patch,
                       preferred_element_type=jnp.float32)            # (2C, HW) f32
        common = base[0:C, :] + bias_ref[0:C, :]
        spec = base[C:2 * C, :] + bias_ref[C:2 * C, :]

        # ---- template 1: conv_nn (KxK depthwise) via diagonal-expanded weight --------
        patch = taps(spec, kk_offs).astype(jnp.bfloat16)
        nn_out = jnp.dot(wkk_ref[2 * C:3 * C, :], patch,
                         preferred_element_type=jnp.float32) + bias_ref[2 * C:3 * C, :]
        spec = spec + nn_out * y[0:1, 0:1]

        # ---- template 2: conv_11 (1x1) ------------------------------------------------
        out11 = jnp.dot(w11_ref[...], spec.astype(jnp.bfloat16),
                        preferred_element_type=jnp.float32) + bias_ref[3 * C:4 * C, :]
        spec = spec + out11 * y[1:2, 0:1]

        # ---- template 3: conv_n1 (Kx1) ------------------------------------------------
        patch = taps(spec, n1_offs).astype(jnp.bfloat16)              # (K*C, HW)
        outn1 = jnp.dot(wsep_ref[0:C, :], patch,
                        preferred_element_type=jnp.float32) + bias_ref[4 * C:5 * C, :]
        spec = spec + outn1 * y[2:3, 0:1]

        # ---- template 4: conv_1n (1xK) ------------------------------------------------
        patch = taps(spec, w1_offs).astype(jnp.bfloat16)              # (K*C, HW)
        out1n = jnp.dot(wsep_ref[C:2 * C, :], patch,
                        preferred_element_type=jnp.float32) + bias_ref[5 * C:6 * C, :]
        spec = spec + out1n * y[3:4, 0:1]

        # ---- lane-dense NCHW-flat stores (no transpose epilogue) ----------------------
        common_ref[b] = common
        spec_ref[b] = spec


# ----------------------------------------------------------------------------
# Wrapper: weight packing (plain JAX) + single pallas_call
# ----------------------------------------------------------------------------
def _oihw_to_lhs(w):
    """OIHW conv weight -> MXU LHS (O, KH*KW*I); column index ordered (kh, kw, cin)."""
    O, I, KH, KW = w.shape
    return jnp.transpose(w, (0, 2, 3, 1)).reshape(O, KH * KW * I)


def _border_masks(H, W, K, pad):
    """(K*K, H*W) f32 masks: 1 where the shifted tap stays inside the image."""
    hh, ww = np.meshgrid(np.arange(H), np.arange(W), indexing="ij")
    hh, ww = hh.reshape(-1), ww.reshape(-1)
    m = np.zeros((K * K, H * W), np.float32)
    for kh in range(K):
        for kw in range(K):
            dh, dw = kh - pad, kw - pad
            ok = (hh + dh >= 0) & (hh + dh < H) & (ww + dw >= 0) & (ww + dw < W)
            m[kh * K + kw] = ok.astype(np.float32)
    return jnp.asarray(m)


def _images_per_step(N):
    """Largest divisor of N that still leaves >= 2 grid steps (both v7x TCs busy)."""
    best = 1
    for nb in range(1, N + 1):
        if N % nb == 0 and N // nb >= 2:
            best = nb
    return best


def conv2d_lrd_dynamic_forward(params, x_nchw, *, padding):
    N, C, H, W = x_nchw.shape
    K = params["common_bases"].shape[-1]
    assert padding == K // 2, "`padding` must equal `kernel_size // 2`"
    HW = H * W
    S = params["att_w1"].shape[1]

    # NCHW-flat f32 input: no transpose pass, residual chain stays f32 in-kernel.
    x_flat = x_nchw.reshape(N, C, HW).astype(jnp.float32)

    # mode1: reconstruct the DCF kernels; pack all MXU LHS weights (rows = out channels).
    common_k = jnp.einsum("oib,bhw->oihw", params["common_weight"], params["common_bases"])
    specific_k = jnp.einsum("oib,bhw->oihw", params["specific_weight"], params["specific_bases"])
    dw_taps = params["conv_nn_w"][:, 0]                                        # (C, K, K)
    w_nn = (dw_taps[:, :, :, None]
            * jnp.eye(C, dtype=jnp.float32)[:, None, None, :]).reshape(C, K * K * C)
    w_kk = jnp.concatenate([_oihw_to_lhs(common_k), _oihw_to_lhs(specific_k), w_nn],
                           axis=0).astype(jnp.bfloat16)                        # (3C, K*K*C)
    w_sep = jnp.concatenate([_oihw_to_lhs(params["conv_n1_w"]),
                             _oihw_to_lhs(params["conv_1n_w"])],
                            axis=0).astype(jnp.bfloat16)                       # (2C, K*C)
    w_11 = params["conv_11_w"][:, :, 0, 0].astype(jnp.bfloat16)                # (C, C)

    bias_pack = jnp.concatenate([params["common_bias"], params["specific_bias"],
                                 params["conv_nn_b"], params["conv_11_b"],
                                 params["conv_n1_b"], params["conv_1n_b"]]
                                ).reshape(6 * C, 1).astype(jnp.float32)

    r_ab1, r_aw2, r_ab2, n_rows = _att_rows(C)
    att_pack = jnp.zeros((n_rows, S), jnp.float32)
    att_pack = att_pack.at[0:C, :].set(params["att_w1"])
    att_pack = att_pack.at[r_ab1, :].set(params["att_b1"])
    att_pack = att_pack.at[r_aw2:r_aw2 + 4, :].set(params["att_w2"].T)
    att_pack = att_pack.at[r_ab2:r_ab2 + 4, 0].set(params["att_b2"])

    masks = _border_masks(H, W, K, padding)                                    # (K*K, HW)

    nb = _images_per_step(N)
    kernel = functools.partial(_fused_lrd_kernel, K=K, pad=padding, H=H, W=W)
    const = lambda arr: pl.BlockSpec(arr.shape, lambda n: (0,) * arr.ndim)

    common_flat, spec_flat = pl.pallas_call(
        kernel,
        out_shape=(jax.ShapeDtypeStruct((N, C, HW), jnp.float32),
                   jax.ShapeDtypeStruct((N, C, HW), jnp.float32)),
        grid=(N // nb,),
        in_specs=[
            pl.BlockSpec((nb, C, HW), lambda n: (n, 0, 0)),
            const(masks), const(w_kk), const(w_sep), const(w_11),
            const(bias_pack), const(att_pack),
        ],
        out_specs=(pl.BlockSpec((nb, C, HW), lambda n: (n, 0, 0)),
                   pl.BlockSpec((nb, C, HW), lambda n: (n, 0, 0))),
        compiler_params=pltpu.CompilerParams(dimension_semantics=("parallel",)),
    )(x_flat, masks, w_kk, w_sep, w_11, bias_pack, att_pack)

    # (N, C, H*W) is already NCHW-flat: the reshape is free (no transpose pass).
    common_nchw = common_flat.reshape(N, C, H, W)
    specific_nchw = spec_flat.reshape(N, C, H, W)
    feature = jnp.concatenate([common_nchw, specific_nchw], axis=2)    # module cats along H
    return feature, common_nchw, specific_nchw


# ----------------------------------------------------------------------------
# Pure-JAX reference (f32, HIGHEST precision) for validation
# ----------------------------------------------------------------------------
def _reference_forward(params, x, *, padding):
    N, C, H, W = x.shape
    K = params["common_bases"].shape[-1]
    dn = lax.conv_dimension_numbers(x.shape, (C, C, K, K), ("NCHW", "OIHW", "NCHW"))

    def conv(inp, w, b, pad_hw, groups=1):
        o = lax.conv_general_dilated(inp, w, (1, 1), pad_hw, dimension_numbers=dn,
                                     feature_group_count=groups,
                                     precision=lax.Precision.HIGHEST)
        return o + b[None, :, None, None]

    common_k = jnp.einsum("oib,bhw->oihw", params["common_weight"], params["common_bases"])
    specific_k = jnp.einsum("oib,bhw->oihw", params["specific_weight"], params["specific_bases"])
    p2 = ((padding, padding), (padding, padding))
    common = conv(x, common_k, params["common_bias"], p2)
    spec = conv(x, specific_k, params["specific_bias"], p2)

    pooled = jnp.mean(x, axis=(2, 3))
    h = jnp.maximum(pooled @ params["att_w1"] + params["att_b1"], 0.0)
    z = h @ params["att_w2"] + params["att_b2"]
    y = jnp.clip(z + 3.0, 0.0, 6.0) / 6.0                              # (N, 4)

    templates = [
        (params["conv_nn_w"], params["conv_nn_b"], p2, C),
        (params["conv_11_w"], params["conv_11_b"], ((0, 0), (0, 0)), 1),
        (params["conv_n1_w"], params["conv_n1_b"], ((padding, padding), (0, 0)), 1),
        (params["conv_1n_w"], params["conv_1n_b"], ((0, 0), (padding, padding)), 1),
    ]
    for i, (w, b, pad_hw, g) in enumerate(templates):
        spec = spec + conv(spec, w, b, pad_hw, g) * y[:, i][:, None, None, None]
    feature = jnp.concatenate([common, spec], axis=2)
    return feature, common, spec


# ----------------------------------------------------------------------------
# Parameter construction (random stand-ins with the module's exact shapes)
# ----------------------------------------------------------------------------
def make_params(key, cin, cout, K, num_bases, squeeze):
    assert cin == cout, "Conv2d_LRD_Dynamic templates require in_channels == out_channels"
    common_nb = 2
    spec_nb = num_bases - common_nb
    ks = jax.random.split(key, 18)
    init = lambda k, shp, s=0.1: jax.random.normal(k, shp, jnp.float32) * s
    p = {}
    # TODO(synk): Fourier-Bessel bases from calculate_FB_bases replaced by deterministic
    # random bases of identical shape (no tables / checkpoints in-script).
    p["common_bases"] = init(ks[0], (common_nb, K, K))
    p["specific_bases"] = init(ks[1], (spec_nb, K, K))
    p["common_weight"] = init(ks[2], (cout, cin, common_nb))
    p["specific_weight"] = init(ks[3], (cout, cin, spec_nb))
    p["common_bias"] = init(ks[4], (cout,))
    p["specific_bias"] = init(ks[5], (cout,))
    # kernel templates (PyTorch OIHW layouts)
    p["conv_nn_w"] = init(ks[6], (cout, 1, K, K))        # depthwise (groups == C)
    p["conv_nn_b"] = init(ks[7], (cout,))
    p["conv_11_w"] = init(ks[8], (cout, cin, 1, 1))
    p["conv_11_b"] = init(ks[9], (cout,))
    p["conv_n1_w"] = init(ks[10], (cout, cin, K, 1))
    p["conv_n1_b"] = init(ks[11], (cout,))
    p["conv_1n_w"] = init(ks[12], (cout, cin, 1, K))
    p["conv_1n_b"] = init(ks[13], (cout,))
    # attention (1x1 convs == linear layers)
    p["att_w1"] = init(ks[14], (cin, squeeze))
    p["att_b1"] = init(ks[15], (squeeze,))
    p["att_w2"] = init(ks[16], (squeeze, 4))
    p["att_b2"] = init(ks[17], (4,))
    return p


if __name__ == "__main__":
    N, C, H, W = 2, 8, 16, 16
    K, pad, num_bases, squeeze = 3, 1, 6, 4

    key = jax.random.PRNGKey(0)
    kx, kp = jax.random.split(key)
    x = jax.random.normal(kx, (N, C, H, W), jnp.float32)
    params = make_params(kp, C, C, K, num_bases, squeeze)

    fwd = jax.jit(functools.partial(conv2d_lrd_dynamic_forward, padding=pad))
    feature, common_f, specific_f = fwd(params, x)
    jax.block_until_ready((feature, common_f, specific_f))

    assert feature.shape == (N, C, 2 * H, W), feature.shape
    assert common_f.shape == (N, C, H, W), common_f.shape
    assert specific_f.shape == (N, C, H, W), specific_f.shape
    assert bool(jnp.isfinite(feature).all())

    # Validate against a pure-JAX f32 reference (kernel uses bf16 MXU operands -> loose tol).
    ref = jax.jit(functools.partial(_reference_forward, padding=pad))(params, x)
    for got, want in zip((feature, common_f, specific_f), ref):
        np.testing.assert_allclose(np.asarray(got), np.asarray(want), rtol=5e-2, atol=5e-2)

    print("KERNEL_OK")
</pallas_src>

<mosaic_0001>
module attributes {stable_mosaic.version = 11 : i64} {
  func.func @_fused_lrd_kernel(%arg0: i32, %arg1: memref<1x8x256xf32, #tpu.memory_space<vmem>>, %arg2: memref<9x256xf32, #tpu.memory_space<vmem>>, %arg3: memref<24x72xbf16, #tpu.memory_space<vmem>>, %arg4: memref<16x24xbf16, #tpu.memory_space<vmem>>, %arg5: memref<8x8xbf16, #tpu.memory_space<vmem>>, %arg6: memref<48x1xf32, #tpu.memory_space<vmem>>, %arg7: memref<28x4xf32, #tpu.memory_space<vmem>>, %arg8: memref<1x8x256xf32, #tpu.memory_space<vmem>>, %arg9: memref<1x8x256xf32, #tpu.memory_space<vmem>>) attributes {dimension_semantics = [#tpu.dimension_semantics<parallel>], iteration_bounds = array<i64: 2>, scalar_prefetch = 0 : i64, scratch_operands = 0 : i64, tpu.core_type = #tpu.core_type<tc>, window_params = [{transform_indices = @transform_0, window_bounds = array<i64: 1, 8, 256>}, {pipeline_mode = #tpu.pipeline_mode<synchronous>, transform_indices = @transform_1, window_bounds = array<i64: 9, 256>}, {pipeline_mode = #tpu.pipeline_mode<synchronous>, transform_indices = @transform_2, window_bounds = array<i64: 24, 72>}, {pipeline_mode = #tpu.pipeline_mode<synchronous>, transform_indices = @transform_3, window_bounds = array<i64: 16, 24>}, {pipeline_mode = #tpu.pipeline_mode<synchronous>, transform_indices = @transform_4, window_bounds = array<i64: 8, 8>}, {pipeline_mode = #tpu.pipeline_mode<synchronous>, transform_indices = @transform_5, window_bounds = array<i64: 48, 1>}, {pipeline_mode = #tpu.pipeline_mode<synchronous>, transform_indices = @transform_6, window_bounds = array<i64: 28, 4>}, {transform_indices = @transform_7, window_bounds = array<i64: 1, 8, 256>}, {transform_indices = @transform_8, window_bounds = array<i64: 1, 8, 256>}]} {
    %c0 = arith.constant 0 : index
    %c0_0 = arith.constant 0 : index
    %c0_1 = arith.constant 0 : index
    %0 = vector.load %arg1[%c0, %c0_0, %c0_1] : memref<1x8x256xf32, #tpu.memory_space<vmem>>, vector<1x8x256xf32>
    %1 = vector.shape_cast %0 : vector<1x8x256xf32> to vector<8x256xf32>
    %cst = arith.constant dense<0.000000e+00> : vector<8xf32>
    %2 = vector.multi_reduction <add>, %1, %cst [1] : vector<8x256xf32> to vector<8xf32>
    %3 = vector.shape_cast %2 : vector<8xf32> to vector<8x1xf32>
    %cst_2 = arith.constant 3.906250e-03 : f32
    %4 = vector.broadcast %cst_2 : f32 to vector<8x1xf32>
    %5 = arith.mulf %3, %4 : vector<8x1xf32>
    %c0_3 = arith.constant 0 : index
    %c0_4 = arith.constant 0 : index
    %6 = vector.load %arg7[%c0_3, %c0_4] : memref<28x4xf32, #tpu.memory_space<vmem>>, vector<8x4xf32>
    %7 = vector.broadcast %5 : vector<8x1xf32> to vector<8x4xf32>
    %8 = arith.mulf %7, %6 : vector<8x4xf32>
    %cst_5 = arith.constant dense<0.000000e+00> : vector<4xf32>
    %9 = vector.multi_reduction <add>, %8, %cst_5 [0] : vector<8x4xf32> to vector<4xf32>
    %10 = vector.shape_cast %9 : vector<4xf32> to vector<1x4xf32>
    %c8 = arith.constant 8 : index
    %c0_6 = arith.constant 0 : index
    %11 = vector.load %arg7[%c8, %c0_6] : memref<28x4xf32, #tpu.memory_space<vmem>>, vector<1x4xf32>
    %12 = arith.addf %10, %11 : vector<1x4xf32>
    %cst_7 = arith.constant 0.000000e+00 : f32
    %13 = vector.broadcast %cst_7 : f32 to vector<1x4xf32>
    %14 = arith.maximumf %12, %13 : vector<1x4xf32>
    %c16 = arith.constant 16 : index
    %c0_8 = arith.constant 0 : index
    %15 = vector.load %arg7[%c16, %c0_8] : memref<28x4xf32, #tpu.memory_space<vmem>>, vector<4x4xf32>
    %16 = vector.broadcast %14 : vector<1x4xf32> to vector<4x4xf32>
    %17 = arith.mulf %15, %16 : vector<4x4xf32>
    %cst_9 = arith.constant dense<0.000000e+00> : vector<4xf32>
    %18 = vector.multi_reduction <add>, %17, %cst_9 [1] : vector<4x4xf32> to vector<4xf32>
    %19 = vector.shape_cast %18 : vector<4xf32> to vector<4x1xf32>
    %c24 = arith.constant 24 : index
    %c0_10 = arith.constant 0 : index
    %20 = vector.load %arg7[%c24, %c0_10] : memref<28x4xf32, #tpu.memory_space<vmem>>, vector<4x1xf32>
    %21 = arith.addf %19, %20 : vector<4x1xf32>
    %cst_11 = arith.constant 3.000000e+00 : f32
    %22 = vector.broadcast %cst_11 : f32 to vector<4x1xf32>
    %23 = arith.addf %21, %22 : vector<4x1xf32>
    %cst_12 = arith.constant 0.000000e+00 : f32
    %cst_13 = arith.constant 6.000000e+00 : f32
    %24 = vector.broadcast %cst_12 : f32 to vector<4x1xf32>
    %25 = arith.maximumf %24, %23 : vector<4x1xf32>
    %26 = vector.broadcast %cst_13 : f32 to vector<4x1xf32>
    %27 = arith.minimumf %26, %25 : vector<4x1xf32>
    %cst_14 = arith.constant 0.166666672 : f32
    %28 = vector.broadcast %cst_14 : f32 to vector<4x1xf32>
    %29 = arith.mulf %27, %28 : vector<4x1xf32>
    %c17_i32 = arith.constant 17 : i32
    %30 = tpu.dynamic_rotate %1 by %c17_i32 dim 1 : vector<8x256xf32>, i32 -> vector<8x256xf32>
    %c0_15 = arith.constant 0 : index
    %c0_16 = arith.constant 0 : index
    %31 = vector.load %arg2[%c0_15, %c0_16] : memref<9x256xf32, #tpu.memory_space<vmem>>, vector<1x256xf32>
    %32 = vector.broadcast %31 : vector<1x256xf32> to vector<8x256xf32>
    %33 = arith.mulf %30, %32 : vector<8x256xf32>
    %c16_i32 = arith.constant 16 : i32
    %34 = tpu.dynamic_rotate %1 by %c16_i32 dim 1 : vector<8x256xf32>, i32 -> vector<8x256xf32>
    %c1 = arith.constant 1 : index
    %c0_17 = arith.constant 0 : index
    %35 = vector.load %arg2[%c1, %c0_17] : memref<9x256xf32, #tpu.memory_space<vmem>>, vector<1x256xf32>
    %36 = vector.broadcast %35 : vector<1x256xf32> to vector<8x256xf32>
    %37 = arith.mulf %34, %36 : vector<8x256xf32>
    %c15_i32 = arith.constant 15 : i32
    %38 = tpu.dynamic_rotate %1 by %c15_i32 dim 1 : vector<8x256xf32>, i32 -> vector<8x256xf32>
    %c2 = arith.constant 2 : index
    %c0_18 = arith.constant 0 : index
    %39 = vector.load %arg2[%c2, %c0_18] : memref<9x256xf32, #tpu.memory_space<vmem>>, vector<1x256xf32>
    %40 = vector.broadcast %39 : vector<1x256xf32> to vector<8x256xf32>
    %41 = arith.mulf %38, %40 : vector<8x256xf32>
    %c1_i32 = arith.constant 1 : i32
    %42 = tpu.dynamic_rotate %1 by %c1_i32 dim 1 : vector<8x256xf32>, i32 -> vector<8x256xf32>
    %c3 = arith.constant 3 : index
    %c0_19 = arith.constant 0 : index
    %43 = vector.load %arg2[%c3, %c0_19] : memref<9x256xf32, #tpu.memory_space<vmem>>, vector<1x256xf32>
    %44 = vector.broadcast %43 : vector<1x256xf32> to vector<8x256xf32>
    %45 = arith.mulf %42, %44 : vector<8x256xf32>
    %c255_i32 = arith.constant 255 : i32
    %46 = tpu.dynamic_rotate %1 by %c255_i32 dim 1 : vector<8x256xf32>, i32 -> vector<8x256xf32>
    %c5 = arith.constant 5 : index
    %c0_20 = arith.constant 0 : index
    %47 = vector.load %arg2[%c5, %c0_20] : memref<9x256xf32, #tpu.memory_space<vmem>>, vector<1x256xf32>
    %48 = vector.broadcast %47 : vector<1x256xf32> to vector<8x256xf32>
    %49 = arith.mulf %46, %48 : vector<8x256xf32>
    %c241_i32 = arith.constant 241 : i32
    %50 = tpu.dynamic_rotate %1 by %c241_i32 dim 1 : vector<8x256xf32>, i32 -> vector<8x256xf32>
    %c6 = arith.constant 6 : index
    %c0_21 = arith.constant 0 : index
    %51 = vector.load %arg2[%c6, %c0_21] : memref<9x256xf32, #tpu.memory_space<vmem>>, vector<1x256xf32>
    %52 = vector.broadcast %51 : vector<1x256xf32> to vector<8x256xf32>
    %53 = arith.mulf %50, %52 : vector<8x256xf32>
    %c240_i32 = arith.constant 240 : i32
    %54 = tpu.dynamic_rotate %1 by %c240_i32 dim 1 : vector<8x256xf32>, i32 -> vector<8x256xf32>
    %c7 = arith.constant 7 : index
    %c0_22 = arith.constant 0 : index
    %55 = vector.load %arg2[%c7, %c0_22] : memref<9x256xf32, #tpu.memory_space<vmem>>, vector<1x256xf32>
    %56 = vector.broadcast %55 : vector<1x256xf32> to vector<8x256xf32>
    %57 = arith.mulf %54, %56 : vector<8x256xf32>
    %c239_i32 = arith.constant 239 : i32
    %58 = tpu.dynamic_rotate %1 by %c239_i32 dim 1 : vector<8x256xf32>, i32 -> vector<8x256xf32>
    %c8_23 = arith.constant 8 : index
    %c0_24 = arith.constant 0 : index
    %59 = vector.load %arg2[%c8_23, %c0_24] : memref<9x256xf32, #tpu.memory_space<vmem>>, vector<1x256xf32>
    %60 = vector.broadcast %59 : vector<1x256xf32> to vector<8x256xf32>
    %61 = arith.mulf %58, %60 : vector<8x256xf32>
    %62 = tpu.concatenate %33, %37, %41, %45, %1, %49, %53, %57, %61 in 0 : vector<8x256xf32>, vector<8x256xf32>, vector<8x256xf32>, vector<8x256xf32>, vector<8x256xf32>, vector<8x256xf32>, vector<8x256xf32>, vector<8x256xf32>, vector<8x256xf32> -> vector<72x256xf32>
    %63 = arith.truncf %62 : vector<72x256xf32> to vector<72x256xbf16>
    %c0_25 = arith.constant 0 : index
    %c0_26 = arith.constant 0 : index
    %64 = vector.load %arg3[%c0_25, %c0_26] : memref<24x72xbf16, #tpu.memory_space<vmem>>, vector<16x72xbf16>
    %cst_27 = arith.constant dense<0.000000e+00> : vector<16x256xf32>
    %65 = tpu.matmul %64, %63, %cst_27 {dimension_numbers = #tpu.dot_dimension_numbers<[1], [0], [0], [1], [0, 0, 1, 1], [], []>} : vector<16x72xbf16>, vector<72x256xbf16>, vector<16x256xf32> -> vector<16x256xf32>
    %66 = vector.extract_strided_slice %65 {offsets = [0, 0], sizes = [8, 256], strides = [1, 1]} : vector<16x256xf32> to vector<8x256xf32>
    %c0_28 = arith.constant 0 : index
    %c0_29 = arith.constant 0 : index
    %67 = vector.load %arg6[%c0_28, %c0_29] : memref<48x1xf32, #tpu.memory_space<vmem>>, vector<8x1xf32>
    %68 = vector.broadcast %67 : vector<8x1xf32> to vector<8x256xf32>
    %69 = arith.addf %66, %68 : vector<8x256xf32>
    %70 = vector.extract_strided_slice %65 {offsets = [8, 0], sizes = [8, 256], strides = [1, 1]} : vector<16x256xf32> to vector<8x256xf32>
    %c8_30 = arith.constant 8 : index
    %c0_31 = arith.constant 0 : index
    %71 = vector.load %arg6[%c8_30, %c0_31] : memref<48x1xf32, #tpu.memory_space<vmem>>, vector<8x1xf32>
    %72 = vector.broadcast %71 : vector<8x1xf32> to vector<8x256xf32>
    %73 = arith.addf %70, %72 : vector<8x256xf32>
    %c17_i32_32 = arith.constant 17 : i32
    %74 = tpu.dynamic_rotate %73 by %c17_i32_32 dim 1 : vector<8x256xf32>, i32 -> vector<8x256xf32>
    %c0_33 = arith.constant 0 : index
    %c0_34 = arith.constant 0 : index
    %75 = vector.load %arg2[%c0_33, %c0_34] : memref<9x256xf32, #tpu.memory_space<vmem>>, vector<1x256xf32>
    %76 = vector.broadcast %75 : vector<1x256xf32> to vector<8x256xf32>
    %77 = arith.mulf %74, %76 : vector<8x256xf32>
    %c16_i32_35 = arith.constant 16 : i32
    %78 = tpu.dynamic_rotate %73 by %c16_i32_35 dim 1 : vector<8x256xf32>, i32 -> vector<8x256xf32>
    %c1_36 = arith.constant 1 : index
    %c0_37 = arith.constant 0 : index
    %79 = vector.load %arg2[%c1_36, %c0_37] : memref<9x256xf32, #tpu.memory_space<vmem>>, vector<1x256xf32>
    %80 = vector.broadcast %79 : vector<1x256xf32> to vector<8x256xf32>
    %81 = arith.mulf %78, %80 : vector<8x256xf32>
    %c15_i32_38 = arith.constant 15 : i32
    %82 = tpu.dynamic_rotate %73 by %c15_i32_38 dim 1 : vector<8x256xf32>, i32 -> vector<8x256xf32>
    %c2_39 = arith.constant 2 : index
    %c0_40 = arith.constant 0 : index
    %83 = vector.load %arg2[%c2_39, %c0_40] : memref<9x256xf32, #tpu.memory_space<vmem>>, vector<1x256xf32>
    %84 = vector.broadcast %83 : vector<1x256xf32> to vector<8x256xf32>
    %85 = arith.mulf %82, %84 : vector<8x256xf32>
    %c1_i32_41 = arith.constant 1 : i32
    %86 = tpu.dynamic_rotate %73 by %c1_i32_41 dim 1 : vector<8x256xf32>, i32 -> vector<8x256xf32>
    %c3_42 = arith.constant 3 : index
    %c0_43 = arith.constant 0 : index
    %87 = vector.load %arg2[%c3_42, %c0_43] : memref<9x256xf32, #tpu.memory_space<vmem>>, vector<1x256xf32>
    %88 = vector.broadcast %87 : vector<1x256xf32> to vector<8x256xf32>
    %89 = arith.mulf %86, %88 : vector<8x256xf32>
    %c255_i32_44 = arith.constant 255 : i32
    %90 = tpu.dynamic_rotate %73 by %c255_i32_44 dim 1 : vector<8x256xf32>, i32 -> vector<8x256xf32>
    %c5_45 = arith.constant 5 : index
    %c0_46 = arith.constant 0 : index
    %91 = vector.load %arg2[%c5_45, %c0_46] : memref<9x256xf32, #tpu.memory_space<vmem>>, vector<1x256xf32>
    %92 = vector.broadcast %91 : vector<1x256xf32> to vector<8x256xf32>
    %93 = arith.mulf %90, %92 : vector<8x256xf32>
    %c241_i32_47 = arith.constant 241 : i32
    %94 = tpu.dynamic_rotate %73 by %c241_i32_47 dim 1 : vector<8x256xf32>, i32 -> vector<8x256xf32>
    %c6_48 = arith.constant 6 : index
    %c0_49 = arith.constant 0 : index
    %95 = vector.load %arg2[%c6_48, %c0_49] : memref<9x256xf32, #tpu.memory_space<vmem>>, vector<1x256xf32>
    %96 = vector.broadcast %95 : vector<1x256xf32> to vector<8x256xf32>
    %97 = arith.mulf %94, %96 : vector<8x256xf32>
    %c240_i32_50 = arith.constant 240 : i32
    %98 = tpu.dynamic_rotate %73 by %c240_i32_50 dim 1 : vector<8x256xf32>, i32 -> vector<8x256xf32>
    %c7_51 = arith.constant 7 : index
    %c0_52 = arith.constant 0 : index
    %99 = vector.load %arg2[%c7_51, %c0_52] : memref<9x256xf32, #tpu.memory_space<vmem>>, vector<1x256xf32>
    %100 = vector.broadcast %99 : vector<1x256xf32> to vector<8x256xf32>
    %101 = arith.mulf %98, %100 : vector<8x256xf32>
    %c239_i32_53 = arith.constant 239 : i32
    %102 = tpu.dynamic_rotate %73 by %c239_i32_53 dim 1 : vector<8x256xf32>, i32 -> vector<8x256xf32>
    %c8_54 = arith.constant 8 : index
    %c0_55 = arith.constant 0 : index
    %103 = vector.load %arg2[%c8_54, %c0_55] : memref<9x256xf32, #tpu.memory_space<vmem>>, vector<1x256xf32>
    %104 = vector.broadcast %103 : vector<1x256xf32> to vector<8x256xf32>
    %105 = arith.mulf %102, %104 : vector<8x256xf32>
    %106 = tpu.concatenate %77, %81, %85, %89, %73, %93, %97, %101, %105 in 0 : vector<8x256xf32>, vector<8x256xf32>, vector<8x256xf32>, vector<8x256xf32>, vector<8x256xf32>, vector<8x256xf32>, vector<8x256xf32>, vector<8x256xf32>, vector<8x256xf32> -> vector<72x256xf32>
    %107 = arith.truncf %106 : vector<72x256xf32> to vector<72x256xbf16>
    %c16_56 = arith.constant 16 : index
    %c0_57 = arith.constant 0 : index
    %108 = vector.load %arg3[%c16_56, %c0_57] : memref<24x72xbf16, #tpu.memory_space<vmem>>, vector<8x72xbf16>
    %cst_58 = arith.constant dense<0.000000e+00> : vector<8x256xf32>
    %109 = tpu.matmul %108, %107, %cst_58 {dimension_numbers = #tpu.dot_dimension_numbers<[1], [0], [0], [1], [0, 0, 1, 1], [], []>} : vector<8x72xbf16>, vector<72x256xbf16>, vector<8x256xf32> -> vector<8x256xf32>
    %c16_59 = arith.constant 16 : index
    %c0_60 = arith.constant 0 : index
    %110 = vector.load %arg6[%c16_59, %c0_60] : memref<48x1xf32, #tpu.memory_space<vmem>>, vector<8x1xf32>
    %111 = vector.broadcast %110 : vector<8x1xf32> to vector<8x256xf32>
    %112 = arith.addf %109, %111 : vector<8x256xf32>
    %113 = vector.extract_strided_slice %29 {offsets = [0, 0], sizes = [1, 1], strides = [1, 1]} : vector<4x1xf32> to vector<1x1xf32>
    %114 = vector.broadcast %113 : vector<1x1xf32> to vector<8x256xf32>
    %115 = arith.mulf %112, %114 : vector<8x256xf32>
    %116 = arith.addf %73, %115 : vector<8x256xf32>
    %c0_61 = arith.constant 0 : index
    %c0_62 = arith.constant 0 : index
    %117 = vector.load %arg5[%c0_61, %c0_62] : memref<8x8xbf16, #tpu.memory_space<vmem>>, vector<8x8xbf16>
    %118 = arith.truncf %116 : vector<8x256xf32> to vector<8x256xbf16>
    %cst_63 = arith.constant dense<0.000000e+00> : vector<8x256xf32>
    %119 = tpu.matmul %117, %118, %cst_63 {dimension_numbers = #tpu.dot_dimension_numbers<[1], [0], [0], [1], [0, 0, 1, 1], [], []>} : vector<8x8xbf16>, vector<8x256xbf16>, vector<8x256xf32> -> vector<8x256xf32>
    %c24_64 = arith.constant 24 : index
    %c0_65 = arith.constant 0 : index
    %120 = vector.load %arg6[%c24_64, %c0_65] : memref<48x1xf32, #tpu.memory_space<vmem>>, vector<8x1xf32>
    %121 = vector.broadcast %120 : vector<8x1xf32> to vector<8x256xf32>
    %122 = arith.addf %119, %121 : vector<8x256xf32>
    %123 = vector.extract_strided_slice %29 {offsets = [1, 0], sizes = [1, 1], strides = [1, 1]} : vector<4x1xf32> to vector<1x1xf32>
    %124 = vector.broadcast %123 : vector<1x1xf32> to vector<8x256xf32>
    %125 = arith.mulf %122, %124 : vector<8x256xf32>
    %126 = arith.addf %116, %125 : vector<8x256xf32>
    %c16_i32_66 = arith.constant 16 : i32
    %127 = tpu.dynamic_rotate %126 by %c16_i32_66 dim 1 : vector<8x256xf32>, i32 -> vector<8x256xf32>
    %c1_67 = arith.constant 1 : index
    %c0_68 = arith.constant 0 : index
    %128 = vector.load %arg2[%c1_67, %c0_68] : memref<9x256xf32, #tpu.memory_space<vmem>>, vector<1x256xf32>
    %129 = vector.broadcast %128 : vector<1x256xf32> to vector<8x256xf32>
    %130 = arith.mulf %127, %129 : vector<8x256xf32>
    %c240_i32_69 = arith.constant 240 : i32
    %131 = tpu.dynamic_rotate %126 by %c240_i32_69 dim 1 : vector<8x256xf32>, i32 -> vector<8x256xf32>
    %c7_70 = arith.constant 7 : index
    %c0_71 = arith.constant 0 : index
    %132 = vector.load %arg2[%c7_70, %c0_71] : memref<9x256xf32, #tpu.memory_space<vmem>>, vector<1x256xf32>
    %133 = vector.broadcast %132 : vector<1x256xf32> to vector<8x256xf32>
    %134 = arith.mulf %131, %133 : vector<8x256xf32>
    %135 = tpu.concatenate %130, %126, %134 in 0 : vector<8x256xf32>, vector<8x256xf32>, vector<8x256xf32> -> vector<24x256xf32>
    %136 = arith.truncf %135 : vector<24x256xf32> to vector<24x256xbf16>
    %c0_72 = arith.constant 0 : index
    %c0_73 = arith.constant 0 : index
    %137 = vector.load %arg4[%c0_72, %c0_73] : memref<16x24xbf16, #tpu.memory_space<vmem>>, vector<8x24xbf16>
    %cst_74 = arith.constant dense<0.000000e+00> : vector<8x256xf32>
    %138 = tpu.matmul %137, %136, %cst_74 {dimension_numbers = #tpu.dot_dimension_numbers<[1], [0], [0], [1], [0, 0, 1, 1], [], []>} : vector<8x24xbf16>, vector<24x256xbf16>, vector<8x256xf32> -> vector<8x256xf32>
    %c32 = arith.constant 32 : index
    %c0_75 = arith.constant 0 : index
    %139 = vector.load %arg6[%c32, %c0_75] : memref<48x1xf32, #tpu.memory_space<vmem>>, vector<8x1xf32>
    %140 = vector.broadcast %139 : vector<8x1xf32> to vector<8x256xf32>
    %141 = arith.addf %138, %140 : vector<8x256xf32>
    %142 = vector.extract_strided_slice %29 {offsets = [2, 0], sizes = [1, 1], strides = [1, 1]} : vector<4x1xf32> to vector<1x1xf32>
    %143 = vector.broadcast %142 : vector<1x1xf32> to vector<8x256xf32>
    %144 = arith.mulf %141, %143 : vector<8x256xf32>
    %145 = arith.addf %126, %144 : vector<8x256xf32>
    %c1_i32_76 = arith.constant 1 : i32
    %146 = tpu.dynamic_rotate %145 by %c1_i32_76 dim 1 : vector<8x256xf32>, i32 -> vector<8x256xf32>
    %c3_77 = arith.constant 3 : index
    %c0_78 = arith.constant 0 : index
    %147 = vector.load %arg2[%c3_77, %c0_78] : memref<9x256xf32, #tpu.memory_space<vmem>>, vector<1x256xf32>
    %148 = vector.broadcast %147 : vector<1x256xf32> to vector<8x256xf32>
    %149 = arith.mulf %146, %148 : vector<8x256xf32>
    %c255_i32_79 = arith.constant 255 : i32
    %150 = tpu.dynamic_rotate %145 by %c255_i32_79 dim 1 : vector<8x256xf32>, i32 -> vector<8x256xf32>
    %c5_80 = arith.constant 5 : index
    %c0_81 = arith.constant 0 : index
    %151 = vector.load %arg2[%c5_80, %c0_81] : memref<9x256xf32, #tpu.memory_space<vmem>>, vector<1x256xf32>
    %152 = vector.broadcast %151 : vector<1x256xf32> to vector<8x256xf32>
    %153 = arith.mulf %150, %152 : vector<8x256xf32>
    %154 = tpu.concatenate %149, %145, %153 in 0 : vector<8x256xf32>, vector<8x256xf32>, vector<8x256xf32> -> vector<24x256xf32>
    %155 = arith.truncf %154 : vector<24x256xf32> to vector<24x256xbf16>
    %c8_82 = arith.constant 8 : index
    %c0_83 = arith.constant 0 : index
    %156 = vector.load %arg4[%c8_82, %c0_83] : memref<16x24xbf16, #tpu.memory_space<vmem>>, vector<8x24xbf16>
    %cst_84 = arith.constant dense<0.000000e+00> : vector<8x256xf32>
    %157 = tpu.matmul %156, %155, %cst_84 {dimension_numbers = #tpu.dot_dimension_numbers<[1], [0], [0], [1], [0, 0, 1, 1], [], []>} : vector<8x24xbf16>, vector<24x256xbf16>, vector<8x256xf32> -> vector<8x256xf32>
    %c40 = arith.constant 40 : index
    %c0_85 = arith.constant 0 : index
    %158 = vector.load %arg6[%c40, %c0_85] : memref<48x1xf32, #tpu.memory_space<vmem>>, vector<8x1xf32>
    %159 = vector.broadcast %158 : vector<8x1xf32> to vector<8x256xf32>
    %160 = arith.addf %157, %159 : vector<8x256xf32>
    %161 = vector.extract_strided_slice %29 {offsets = [3, 0], sizes = [1, 1], strides = [1, 1]} : vector<4x1xf32> to vector<1x1xf32>
    %162 = vector.broadcast %161 : vector<1x1xf32> to vector<8x256xf32>
    %163 = arith.mulf %160, %162 : vector<8x256xf32>
    %164 = arith.addf %145, %163 : vector<8x256xf32>
    %c0_86 = arith.constant 0 : index
    %c0_87 = arith.constant 0 : index
    %c0_88 = arith.constant 0 : index
    %165 = vector.load %arg8[%c0_86, %c0_87, %c0_88] : memref<1x8x256xf32, #tpu.memory_space<vmem>>, vector<1x8x256xf32>
    %166 = vector.shape_cast %165 : vector<1x8x256xf32> to vector<8x256xf32>
    %167 = vector.shape_cast %69 : vector<8x256xf32> to vector<1x8x256xf32>
    tpu.vector_store %arg8[%c0_86, %c0_87, %c0_88], %167 {strides = array<i32>} : memref<1x8x256xf32, #tpu.memory_space<vmem>>, vector<1x8x256xf32>,
    %c0_89 = arith.constant 0 : index
    %c0_90 = arith.constant 0 : index
    %c0_91 = arith.constant 0 : index
    %168 = vector.load %arg9[%c0_89, %c0_90, %c0_91] : memref<1x8x256xf32, #tpu.memory_space<vmem>>, vector<1x8x256xf32>
    %169 = vector.shape_cast %168 : vector<1x8x256xf32> to vector<8x256xf32>
    %170 = vector.shape_cast %164 : vector<8x256xf32> to vector<1x8x256xf32>
    tpu.vector_store %arg9[%c0_89, %c0_90, %c0_91], %170 {strides = array<i32>} : memref<1x8x256xf32, #tpu.memory_space<vmem>>, vector<1x8x256xf32>,
    return
  }
  func.func @transform_0(%arg0: i32) -> (i32, i32, i32) {
    %c0_i32 = arith.constant 0 : i32
    %c0_i32_0 = arith.constant 0 : i32
    %c0_i32_1 = arith.constant 0 : i32
    return %arg0, %c0_i32, %c0_i32_0 : i32, i32, i32
  }
  func.func @transform_1(%arg0: i32) -> (i32, i32) {
    %c0_i32 = arith.constant 0 : i32
    %c0_i32_0 = arith.constant 0 : i32
    %c0_i32_1 = arith.constant 0 : i32
    return %c0_i32, %c0_i32_0 : i32, i32
  }
  func.func @transform_2(%arg0: i32) -> (i32, i32) {
    %c0_i32 = arith.constant 0 : i32
    %c0_i32_0 = arith.constant 0 : i32
    %c0_i32_1 = arith.constant 0 : i32
    return %c0_i32, %c0_i32_0 : i32, i32
  }
  func.func @transform_3(%arg0: i32) -> (i32, i32) {
    %c0_i32 = arith.constant 0 : i32
    %c0_i32_0 = arith.constant 0 : i32
    %c0_i32_1 = arith.constant 0 : i32
    return %c0_i32, %c0_i32_0 : i32, i32
  }
  func.func @transform_4(%arg0: i32) -> (i32, i32) {
    %c0_i32 = arith.constant 0 : i32
    %c0_i32_0 = arith.constant 0 : i32
    %c0_i32_1 = arith.constant 0 : i32
    return %c0_i32, %c0_i32_0 : i32, i32
  }
  func.func @transform_5(%arg0: i32) -> (i32, i32) {
    %c0_i32 = arith.constant 0 : i32
    %c0_i32_0 = arith.constant 0 : i32
    %c0_i32_1 = arith.constant 0 : i32
    return %c0_i32, %c0_i32_0 : i32, i32
  }
  func.func @transform_6(%arg0: i32) -> (i32, i32) {
    %c0_i32 = arith.constant 0 : i32
    %c0_i32_0 = arith.constant 0 : i32
    %c0_i32_1 = arith.constant 0 : i32
    return %c0_i32, %c0_i32_0 : i32, i32
  }
  func.func @transform_7(%arg0: i32) -> (i32, i32, i32) {
    %c0_i32 = arith.constant 0 : i32
    %c0_i32_0 = arith.constant 0 : i32
    %c0_i32_1 = arith.constant 0 : i32
    return %arg0, %c0_i32, %c0_i32_0 : i32, i32, i32
  }
  func.func @transform_8(%arg0: i32) -> (i32, i32, i32) {
    %c0_i32 = arith.constant 0 : i32
    %c0_i32_0 = arith.constant 0 : i32
    %c0_i32_1 = arith.constant 0 : i32
    return %arg0, %c0_i32, %c0_i32_0 : i32, i32, i32
  }
}

</mosaic_0001>

<llo_original>
// kernel: conv2d_lrd_dynamic_forward.1
$region0: #{conv2d_lrd_dynamic_forward.1}
  #allocation0 [shape = 'u32[]', space=smem, size = 0x4, offset = 0x4, fixed_abs, tag = 'smem constant byte address 0x4 - core index']
  #allocation1 [shape = 'u32[72,128]{1,0:T(1,128)}', space=vmem, size = 0x9000, scoped, tag = 'internal scratch']
  %s0 = inlined_call_operand.vmem [shape: f32[2,8,256], index: 0, kind: input, shape index: {}]
  %s1 = inlined_call_operand.vmem [shape: f32[9,256], index: 1, kind: input, shape index: {}]
  %s2 = inlined_call_operand.vmem [shape: bf16[24,72], index: 2, kind: input, shape index: {}]
  %s3 = inlined_call_operand.vmem [shape: bf16[16,24], index: 3, kind: input, shape index: {}]
  %s4 = inlined_call_operand.vmem [shape: bf16[8,8], index: 4, kind: input, shape index: {}]
  %s5 = inlined_call_operand.vmem [shape: f32[48,1], index: 5, kind: input, shape index: {}]
  %s6 = inlined_call_operand.vmem [shape: f32[28,4], index: 6, kind: input, shape index: {}]
  %s7 = inlined_call_operand.vmem [shape: f32[2,8,256], index: 7, kind: output, shape index: {0}]
  %s8 = inlined_call_operand.vmem [shape: f32[2,8,256], index: 8, kind: output, shape index: {1}]
  %9 = xla_tuple %s7, %s8
  %s10 = sld [smem:[#allocation0]]
  $region69: #{conv2d_lrd_dynamic_forward.1} parent=0
    _
  %s12 = ssub.s32 1, %s10
  %s13 = scalar_select 0, %s12, %s10
  loop: start=0, step=1, limit=4
  $region2: #{conv2d_lrd_dynamic_forward.1} parent=0 // loop_pre_header
    _
  $region3: #{conv2d_lrd_dynamic_forward.1} parent=0 // loop_header
    %s15 = sphi 0, %s19
    %p16 = scmp.ge.s32.totalorder %s15, 4
    %s25 = sphi 0, %s27
    %s28 = sphi 0, %s25
    %s29 = sphi 0, %s28
    %s45 = sphi 0, %s29
    %s49 = sphi 0, %s49
    %s51 = sphi 0, %s49
    %s52 = sphi 0, %s51
    %s66 = sphi 0, %s52
    %s70 = sphi 0, %s70
    %s72 = sphi 0, %s70
    %s73 = sphi 0, %s72
    %s87 = sphi 0, %s73
    %s91 = sphi 0, %s91
    %s93 = sphi 0, %s91
    %s94 = sphi 0, %s93
    %s108 = sphi 0, %s94
    %s112 = sphi 0, %s112
    %s114 = sphi 0, %s112
    %s115 = sphi 0, %s114
    %s129 = sphi 0, %s115
    %s133 = sphi 0, %s133
    %s135 = sphi 0, %s133
    %s136 = sphi 0, %s135
    %s150 = sphi 0, %s136
    %s154 = sphi 0, %s154
    %s156 = sphi 0, %s154
    %s157 = sphi 0, %s156
    %s171 = sphi 0, %s157
    %s177 = sphi 0, %s179
    %s180 = sphi 0, %s177
    %s181 = sphi 0, %s180
    %s197 = sphi 0, %s181
    %s203 = sphi 0, %s205
    %s206 = sphi 0, %s203
    %s207 = sphi 0, %s206
    %s223 = sphi 0, %s207
  $region4: #{conv2d_lrd_dynamic_forward.1} parent=0 // loop_header_branch
    %18 = sbr.rel (%p16) target = $region8
  $region5: #{conv2d_lrd_dynamic_forward.1} parent=0 // loop_body
    %s20 = ssub.s32 %s15, 1
    %s21 = ssub.s32 %s15, 2
    %s22 = sadd.s32 %s15, 1
    %s23 = ssub.s32 %s15, %s22
    %p24 = scmp.eq.s32.totalorder %s23, 0
    %s26 = sadd.s32 %s25, 1
    %s27 = scalar_select %p24, %s25, %s26
    %p30 = pneg %p24
    %p31 = scmp.eq.s32.totalorder %s15, 1
    %p32 = por %p30, %p31
    %p33 = scmp.ne.s32.totalorder %s25, %s28
    %p34 = scmp.eq.s32.totalorder %s15, 0
    %p35 = por %p33, %p34
    %p36 = scmp.ne.s32.totalorder %s25, %s28
    %p37 = scmp.eq.s32.totalorder %s20, 1
    %p38 = por %p36, %p37
    %p39 = scmp.ne.s32.totalorder %s28, %s29
    %p40 = scmp.eq.s32.totalorder %s20, 0
    %p41 = por %p39, %p40
    %p42 = scmp.ne.s32.totalorder %s28, %s29
    %p43 = scmp.eq.s32.totalorder %s21, 1
    %p44 = por %p42, %p43
    %p46 = scmp.ne.s32.totalorder %s29, %s45
    %p47 = scmp.eq.s32.totalorder %s21, 0
    %p48 = por %p46, %p47
    %s50 = sadd.s32 %s49, 1
    %p53 = scmp.eq.s32.totalorder %s15, 1
    %p54 = scmp.ne.s32.totalorder %s49, %s51
    %p55 = scmp.eq.s32.totalorder %s15, 0
    %p56 = por %p54, %p55
    %p57 = scmp.ne.s32.totalorder %s49, %s51
    %p58 = scmp.eq.s32.totalorder %s20, 1
    %p59 = por %p57, %p58
    %p60 = scmp.ne.s32.totalorder %s51, %s52
    %p61 = scmp.eq.s32.totalorder %s20, 0
    %p62 = por %p60, %p61
    %p63 = scmp.ne.s32.totalorder %s51, %s52
    %p64 = scmp.eq.s32.totalorder %s21, 1
    %p65 = por %p63, %p64
    %p67 = scmp.ne.s32.totalorder %s52, %s66
    %p68 = scmp.eq.s32.totalorder %s21, 0
    %p69 = por %p67, %p68
    %s71 = sadd.s32 %s70, 1
    %p74 = scmp.eq.s32.totalorder %s15, 1
    %p75 = scmp.ne.s32.totalorder %s70, %s72
    %p76 = scmp.eq.s32.totalorder %s15, 0
    %p77 = por %p75, %p76
    %p78 = scmp.ne.s32.totalorder %s70, %s72
    %p79 = scmp.eq.s32.totalorder %s20, 1
    %p80 = por %p78, %p79
    %p81 = scmp.ne.s32.totalorder %s72, %s73
    %p82 = scmp.eq.s32.totalorder %s20, 0
    %p83 = por %p81, %p82
    %p84 = scmp.ne.s32.totalorder %s72, %s73
    %p85 = scmp.eq.s32.totalorder %s21, 1
    %p86 = por %p84, %p85
    %p88 = scmp.ne.s32.totalorder %s73, %s87
    %p89 = scmp.eq.s32.totalorder %s21, 0
    %p90 = por %p88, %p89
    %s92 = sadd.s32 %s91, 1
    %p95 = scmp.eq.s32.totalorder %s15, 1
    %p96 = scmp.ne.s32.totalorder %s91, %s93
    %p97 = scmp.eq.s32.totalorder %s15, 0
    %p98 = por %p96, %p97
    %p99 = scmp.ne.s32.totalorder %s91, %s93
    %p100 = scmp.eq.s32.totalorder %s20, 1
    %p101 = por %p99, %p100
    %p102 = scmp.ne.s32.totalorder %s93, %s94
    %p103 = scmp.eq.s32.totalorder %s20, 0
    %p104 = por %p102, %p103
    %p105 = scmp.ne.s32.totalorder %s93, %s94
    %p106 = scmp.eq.s32.totalorder %s21, 1
    %p107 = por %p105, %p106
    %p109 = scmp.ne.s32.totalorder %s94, %s108
    %p110 = scmp.eq.s32.totalorder %s21, 0
    %p111 = por %p109, %p110
    %s113 = sadd.s32 %s112, 1
    %p116 = scmp.eq.s32.totalorder %s15, 1
    %p117 = scmp.ne.s32.totalorder %s112, %s114
    %p118 = scmp.eq.s32.totalorder %s15, 0
    %p119 = por %p117, %p118
    %p120 = scmp.ne.s32.totalorder %s112, %s114
    %p121 = scmp.eq.s32.totalorder %s20, 1
    %p122 = por %p120, %p121
    %p123 = scmp.ne.s32.totalorder %s114, %s115
    %p124 = scmp.eq.s32.totalorder %s20, 0
    %p125 = por %p123, %p124
    %p126 = scmp.ne.s32.totalorder %s114, %s115
    %p127 = scmp.eq.s32.totalorder %s21, 1
    %p128 = por %p126, %p127
    %p130 = scmp.ne.s32.totalorder %s115, %s129
    %p131 = scmp.eq.s32.totalorder %s21, 0
    %p132 = por %p130, %p131
    %s134 = sadd.s32 %s133, 1
    %p137 = scmp.eq.s32.totalorder %s15, 1
    %p138 = scmp.ne.s32.totalorder %s133, %s135
    %p139 = scmp.eq.s32.totalorder %s15, 0
    %p140 = por %p138, %p139
    %p141 = scmp.ne.s32.totalorder %s133, %s135
    %p142 = scmp.eq.s32.totalorder %s20, 1
    %p143 = por %p141, %p142
    %p144 = scmp.ne.s32.totalorder %s135, %s136
    %p145 = scmp.eq.s32.totalorder %s20, 0
    %p146 = por %p144, %p145
    %p147 = scmp.ne.s32.totalorder %s135, %s136
    %p148 = scmp.eq.s32.totalorder %s21, 1
    %p149 = por %p147, %p148
    %p151 = scmp.ne.s32.totalorder %s136, %s150
    %p152 = scmp.eq.s32.totalorder %s21, 0
    %p153 = por %p151, %p152
    %s155 = sadd.s32 %s154, 1
    %p158 = scmp.eq.s32.totalorder %s15, 1
    %p159 = scmp.ne.s32.totalorder %s154, %s156
    %p160 = scmp.eq.s32.totalorder %s15, 0
    %p161 = por %p159, %p160
    %p162 = scmp.ne.s32.totalorder %s154, %s156
    %p163 = scmp.eq.s32.totalorder %s20, 1
    %p164 = por %p162, %p163
    %p165 = scmp.ne.s32.totalorder %s156, %s157
    %p166 = scmp.eq.s32.totalorder %s20, 0
    %p167 = por %p165, %p166
    %p168 = scmp.ne.s32.totalorder %s156, %s157
    %p169 = scmp.eq.s32.totalorder %s21, 1
    %p170 = por %p168, %p169
    %p172 = scmp.ne.s32.totalorder %s157, %s171
    %p173 = scmp.eq.s32.totalorder %s21, 0
    %p174 = por %p172, %p173
    %s175 = ssub.s32 %s15, %s22
    %p176 = scmp.eq.s32.totalorder %s175, 0
    %s178 = sadd.s32 %s177, 1
    %s179 = scalar_select %p176, %s177, %s178
    %p182 = pneg %p176
    %p183 = scmp.eq.s32.totalorder %s15, 1
    %p184 = por %p182, %p183
    %p185 = scmp.ne.s32.totalorder %s177, %s180
    %p186 = scmp.eq.s32.totalorder %s15, 0
    %p187 = por %p185, %p186
    %p188 = scmp.ne.s32.totalorder %s177, %s180
    %p189 = scmp.eq.s32.totalorder %s20, 1
    %p190 = por %p188, %p189
    %p191 = scmp.ne.s32.totalorder %s180, %s181
    %p192 = scmp.eq.s32.totalorder %s20, 0
    %p193 = por %p191, %p192
    %p194 = scmp.ne.s32.totalorder %s180, %s181
    %p195 = scmp.eq.s32.totalorder %s21, 1
    %p196 = por %p194, %p195
    %p198 = scmp.ne.s32.totalorder %s181, %s197
    %p199 = scmp.eq.s32.totalorder %s21, 0
    %p200 = por %p198, %p199
    %s201 = ssub.s32 %s15, %s22
    %p202 = scmp.eq.s32.totalorder %s201, 0
    %s204 = sadd.s32 %s203, 1
    %s205 = scalar_select %p202, %s203, %s204
    %p208 = pneg %p202
    %p209 = scmp.eq.s32.totalorder %s15, 1
    %p210 = por %p208, %p209
    %p211 = scmp.ne.s32.totalorder %s203, %s206
    %p212 = scmp.eq.s32.totalorder %s15, 0
    %p213 = por %p211, %p212
    %p214 = scmp.ne.s32.totalorder %s203, %s206
    %p215 = scmp.eq.s32.totalorder %s20, 1
    %p216 = por %p214, %p215
    %p217 = scmp.ne.s32.totalorder %s206, %s207
    %p218 = scmp.eq.s32.totalorder %s20, 0
    %p219 = por %p217, %p218
    %p220 = scmp.ne.s32.totalorder %s206, %s207
    %p221 = scmp.eq.s32.totalorder %s21, 1
    %p222 = por %p220, %p221
    %p224 = scmp.ne.s32.totalorder %s207, %s223
    %p225 = scmp.eq.s32.totalorder %s21, 0
    %p226 = por %p224, %p225
    %p227 = scmp.le.s32.totalorder 1, %s15
    %p228 = scmp.lt.s32.totalorder %s15, 3
    %p229 = pnand %p227, %p228
    %p230 = pneg %p229
    // Predicated region
    $region9: #{conv2d_lrd_dynamic_forward.1} parent=5 // pred_check
      _
    $region10: #{conv2d_lrd_dynamic_forward.1} parent=5 // pred_check_branch
      %232 = sbr.rel (%p229) target = $region12
    $region11: #{conv2d_lrd_dynamic_forward.1} parent=5 // pred_region
      %s233 = ssub.s32 %s15, 1
      // Predicated region
      $region13: #{conv2d_lrd_dynamic_forward.1} parent=11 // pred_check
        %p234 = pneg %p62
      $region14: #{conv2d_lrd_dynamic_forward.1} parent=11 // pred_check_branch
        %236 = sbr.rel (%p234) target = $region16
      $region15: #{conv2d_lrd_dynamic_forward.1} parent=11 // pred_region
        _
      $region16: #{conv2d_lrd_dynamic_forward.1} parent=11 // pred_fallthru
        _
      // Predicated region
      $region17: #{conv2d_lrd_dynamic_forward.1} parent=11 // pred_check
        %p237 = pneg %p83
      $region18: #{conv2d_lrd_dynamic_forward.1} parent=11 // pred_check_branch
        %239 = sbr.rel (%p237) target = $region20
      $region19: #{conv2d_lrd_dynamic_forward.1} parent=11 // pred_region
        _
      $region20: #{conv2d_lrd_dynamic_forward.1} parent=11 // pred_fallthru
        _
      // Predicated region
      $region21: #{conv2d_lrd_dynamic_forward.1} parent=11 // pred_check
        %p240 = pneg %p104
      $region22: #{conv2d_lrd_dynamic_forward.1} parent=11 // pred_check_branch
        %242 = sbr.rel (%p240) target = $region24
      $region23: #{conv2d_lrd_dynamic_forward.1} parent=11 // pred_region
        _
      $region24: #{conv2d_lrd_dynamic_forward.1} parent=11 // pred_fallthru
        _
      // Predicated region
      $region25: #{conv2d_lrd_dynamic_forward.1} parent=11 // pred_check
        %p243 = pneg %p125
      $region26: #{conv2d_lrd_dynamic_forward.1} parent=11 // pred_check_branch
        %245 = sbr.rel (%p243) target = $region28
      $region27: #{conv2d_lrd_dynamic_forward.1} parent=11 // pred_region
        _
      $region28: #{conv2d_lrd_dynamic_forward.1} parent=11 // pred_fallthru
        _
      // Predicated region
      $region29: #{conv2d_lrd_dynamic_forward.1} parent=11 // pred_check
        %p246 = pneg %p146
      $region30: #{conv2d_lrd_dynamic_forward.1} parent=11 // pred_check_branch
        %248 = sbr.rel (%p246) target = $region32
      $region31: #{conv2d_lrd_dynamic_forward.1} parent=11 // pred_region
        _
      $region32: #{conv2d_lrd_dynamic_forward.1} parent=11 // pred_fallthru
        _
      // Predicated region
      $region33: #{conv2d_lrd_dynamic_forward.1} parent=11 // pred_check
        %p249 = pneg %p167
      $region34: #{conv2d_lrd_dynamic_forward.1} parent=11 // pred_check_branch
        %251 = sbr.rel (%p249) target = $region36
      $region35: #{conv2d_lrd_dynamic_forward.1} parent=11 // pred_region
        _
      $region36: #{conv2d_lrd_dynamic_forward.1} parent=11 // pred_fallthru
        _
    $region12: #{conv2d_lrd_dynamic_forward.1} parent=5 // pred_fallthru
      _
    %p252 = scmp.lt.s32.totalorder %s15, 2
    // Predicated region
    $region37: #{conv2d_lrd_dynamic_forward.1} parent=5 // pred_check
      %p253 = pneg %p252
    $region38: #{conv2d_lrd_dynamic_forward.1} parent=5 // pred_check_branch
      %255 = sbr.rel (%p253) target = $region40
    $region39: #{conv2d_lrd_dynamic_forward.1} parent=5 // pred_region
      // Predicated region
      $region41: #{conv2d_lrd_dynamic_forward.1} parent=39 // pred_check
        %p256 = pneg %p35
      $region42: #{conv2d_lrd_dynamic_forward.1} parent=39 // pred_check_branch
        %258 = sbr.rel (%p256) target = $region44
      $region43: #{conv2d_lrd_dynamic_forward.1} parent=39 // pred_region
        %p259 = scmp.lt.s32.totalorder %s15, 1
        %s260 = scalar_select %p259, %s15, 1
        %s261 = smul.addr %s260, 2
        %s262 = smul.addr %s261, 8
        %s263 = scalar_lea.vmem %s0, %s262
      $region44: #{conv2d_lrd_dynamic_forward.1} parent=39 // pred_fallthru
        _
    $region40: #{conv2d_lrd_dynamic_forward.1} parent=5 // pred_fallthru
      _
    %p264 = scmp.le.s32.totalorder 1, %s15
    %p265 = scmp.lt.s32.totalorder %s15, 3
    %p266 = pnand %p264, %p265
    %p267 = pneg %p266
    // Predicated region
    $region45: #{conv2d_lrd_dynamic_forward.1} parent=5 // pred_check
      _
    $region46: #{conv2d_lrd_dynamic_forward.1} parent=5 // pred_check_branch
      %269 = sbr.rel (%p266) target = $region48
    $region47: #{conv2d_lrd_dynamic_forward.1} parent=5 // pred_region
      %s270 = ssub.s32 %s15, 1
      %p271 = scmp.lt.s32.totalorder %s20, 1
      %s272 = scalar_select %p271, %s20, 1
      %s273 = smul.addr %s272, 2
      %s274 = smul.addr %s273, 8
      %s275 = scalar_lea.vmem %s0, %s274
      %p276 = pneg %p41
      %p277 = pneg %p38
      %p278 = pneg %p62
      %p279 = pneg %p59
      %p280 = pneg %p83
      %p281 = pneg %p80
      %p282 = pneg %p104
      %p283 = pneg %p101
      %p284 = pneg %p125
      %p285 = pneg %p122
      %p286 = pneg %p146
      %p287 = pneg %p143
      %p288 = pneg %p167
      %p289 = pneg %p164
      %p290 = pneg %p193
      %p291 = pneg %p190
      %p292 = scmp.lt.s32.totalorder %s20, 1
      %s293 = scalar_select %p292, %s20, 1
      %s294 = smul.addr %s293, 2
      %s295 = smul.addr %s294, 8
      %s296 = scalar_lea.vmem %s7, %s295
      %p297 = pneg %p219
      %p298 = pneg %p216
      %p299 = scmp.lt.s32.totalorder %s20, 1
      %s300 = scalar_select %p299, %s20, 1
      %s301 = smul.addr %s300, 2
      %s302 = smul.addr %s301, 8
      %s303 = scalar_lea.vmem %s8, %s302
      %p304 = scmp.lt.s32.totalorder %s20, 1
      %s305 = scalar_select %p304, %s20, 1
      %s306 = smul.addr %s305, 2
      %s307 = smul.addr %s306, 8
      %s308 = scalar_lea.vmem %s0, %s307
      %p309 = scmp.lt.s32.totalorder %s20, 1
      %s310 = scalar_select %p309, %s20, 1
      %s311 = smul.addr %s310, 2
      %s312 = smul.addr %s311, 8
      %s313 = scalar_lea.vmem %s7, %s312
      %p314 = scmp.lt.s32.totalorder %s20, 1
      %s315 = scalar_select %p314, %s20, 1
      %s316 = smul.addr %s315, 2
      %s317 = smul.addr %s316, 8
      %s318 = scalar_lea.vmem %s8, %s317
      %v320 = vld [vmem:[%s308] sm:$0xff]
      %v321 = vld [vmem:[%s308 + $0x8] sm:$0xff]
      %v322 = vadd.f32 %v320, %v321
      %323 = vadd.xlane.f32.xlu0 %v322
      %v324 = vpop.xlane.xlu0 %323
      %v325 = vmul.f32 %v324, 0.00390625
      %v326 = vld [vmem:[%s6] sm:$0xff]
      %v327 = vmul.f32 %v325, %v326
      %vm328 = vcmask 31744
      %v329 = vsel %vm328, %v327, 0.0
      %v330 = vrot.slane %v329, 4
      %v331 = vadd.f32 %v329, %v330
      %v332 = vrot.slane %v331, 2
      %v333 = vadd.f32 %v331, %v332
      %v334 = vrot.slane %v333, 1
      %v335 = vadd.f32 %v333, %v334
      %v336 = vld [vmem:[%s6 + $0x8] sm:$0x1]
      %v337 = vadd.f32 %v335, %v336
      %v338 = vmax.f32 %v337, 0.0
      %v339 = vld [vmem:[%s6 + $0x10] sm:$0xf]
      %v340 = vperm.slane %v338, 0
      %v341 = vmul.f32 %v339, %v340
      %vm342 = vcmask 27648
      %v343 = vsel %vm342, %v341, 0.0
      %344 = vadd.xlane.f32.xlu0 %v343
      %v345 = vpop.xlane.xlu0 %344
      %v346 = vld [vmem:[%s6 + $0x18] sm:$0xf]
      %v347 = vadd.f32 %v345, %v346
      %v348 = vadd.f32 %v347, 3.0
      %v349 = vmax.f32 %v348, 0.0
      %v350 = vmin.f32 %v349, 6.0
      %v351 = vmul.f32 %v350, 0.16666667
      %352 = vrot.lane.b32.xlu0 %v320, 17
      %v353 = vpop.permute.xlu0 %352
      %354 = vrot.lane.b32.xlu0 %v321, 17
      %v355 = vpop.permute.xlu0 %354
      %v356 = vlaneseq
      %v357 = vand.u32 %v356, 127
      %vm358 = vcmp.lt.s32.totalorder %v357, 17
      %v359 = vsel %vm358, %v353, %v355
      %v360 = vsel %vm358, %v355, %v353
      %v361 = vld [vmem:[%s1] ss:$8 sm:$0x3]
      %v363 = vperm.slane %v361, 0
      %v364 = vperm.slane %v361, 1
      %v367 = vmul.f32 %v360, %v363
      %v368 = vmul.f32 %v359, %v364
      %369 = vrot.lane.b32.xlu0 %v320, 16
      %v370 = vpop.permute.xlu0 %369
      %371 = vrot.lane.b32.xlu0 %v321, 16
      %v372 = vpop.permute.xlu0 %371
      %vm373 = vcmp.lt.s32.totalorder %v357, 16
      %v374 = vsel %vm373, %v370, %v372
      %v375 = vsel %vm373, %v372, %v370
      %s376 = scalar_lea.vmem %s1, 1
      %v377 = vld [vmem:[%s376] ss:$8 sm:$0x3]
      %v379 = vperm.slane %v377, 0
      %v380 = vperm.slane %v377, 1
      %v383 = vmul.f32 %v375, %v379
      %v384 = vmul.f32 %v374, %v380
      %385 = vrot.lane.b32.xlu0 %v320, 15
      %v386 = vpop.permute.xlu0 %385
      %387 = vrot.lane.b32.xlu0 %v321, 15
      %v388 = vpop.permute.xlu0 %387
      %vm389 = vcmp.lt.s32.totalorder %v357, 15
      %v390 = vsel %vm389, %v386, %v388
      %v391 = vsel %vm389, %v388, %v386
      %s392 = scalar_lea.vmem %s1, 2
      %v393 = vld [vmem:[%s392] ss:$8 sm:$0x3]
      %v395 = vperm.slane %v393, 0
      %v396 = vperm.slane %v393, 1
      %v399 = vmul.f32 %v391, %v395
      %v400 = vmul.f32 %v390, %v396
      %401 = vrot.lane.b32.xlu0 %v320, 1
      %v402 = vpop.permute.xlu0 %401
      %403 = vrot.lane.b32.xlu0 %v321, 1
      %v404 = vpop.permute.xlu0 %403
      %vm405 = vcmp.lt.s32.totalorder %v357, 1
      %v406 = vsel %vm405, %v402, %v404
      %v407 = vsel %vm405, %v404, %v402
      %s408 = scalar_lea.vmem %s1, 3
      %v409 = vld [vmem:[%s408] ss:$8 sm:$0x3]
      %v411 = vperm.slane %v409, 0
      %v412 = vperm.slane %v409, 1
      %v415 = vmul.f32 %v407, %v411
      %v416 = vmul.f32 %v406, %v412
      %417 = vrot.lane.b32.xlu0 %v320, 127
      %v418 = vpop.permute.xlu0 %417
      %419 = vrot.lane.b32.xlu0 %v321, 127
      %v420 = vpop.permute.xlu0 %419
      %vm421 = vcmp.lt.s32.totalorder %v357, 127
      %v422 = vsel %vm421, %v418, %v420
      %v423 = vsel %vm421, %v420, %v418
      %s424 = scalar_lea.vmem %s1, 5
      %v425 = vld [vmem:[%s424] ss:$8 sm:$0x3]
      %v427 = vperm.slane %v425, 0
      %v428 = vperm.slane %v425, 1
      %v431 = vmul.f32 %v422, %v427
      %v432 = vmul.f32 %v423, %v428
      %433 = vrot.lane.b32.xlu0 %v320, 113
      %v434 = vpop.permute.xlu0 %433
      %435 = vrot.lane.b32.xlu0 %v321, 113
      %v436 = vpop.permute.xlu0 %435
      %vm437 = vcmp.lt.s32.totalorder %v357, 113
      %v438 = vsel %vm437, %v434, %v436
      %v439 = vsel %vm437, %v436, %v434
      %s440 = scalar_lea.vmem %s1, 6
      %v441 = vld [vmem:[%s440] ss:$8 sm:$0x3]
      %v443 = vperm.slane %v441, 0
      %v444 = vperm.slane %v441, 1
      %v447 = vmul.f32 %v438, %v443
      %v448 = vmul.f32 %v439, %v444
      %449 = vrot.lane.b32.xlu0 %v320, 112
      %v450 = vpop.permute.xlu0 %449
      %451 = vrot.lane.b32.xlu0 %v321, 112
      %v452 = vpop.permute.xlu0 %451
      %vm453 = vcmp.lt.s32.totalorder %v357, 112
      %v454 = vsel %vm453, %v450, %v452
      %v455 = vsel %vm453, %v452, %v450
      %s456 = scalar_lea.vmem %s1, 7
      %v457 = vld [vmem:[%s456] ss:$8 sm:$0x3]
      %v459 = vperm.slane %v457, 0
      %v460 = vperm.slane %v457, 1
      %v463 = vmul.f32 %v454, %v459
      %v464 = vmul.f32 %v455, %v460
      %465 = vrot.lane.b32.xlu0 %v320, 111
      %v466 = vpop.permute.xlu0 %465
      %467 = vrot.lane.b32.xlu0 %v321, 111
      %v468 = vpop.permute.xlu0 %467
      %vm469 = vcmp.lt.s32.totalorder %v357, 111
      %v470 = vsel %vm469, %v466, %v468
      %v471 = vsel %vm469, %v468, %v466
      %s472 = scalar_lea.vmem %s1, 16
      %v473 = vld [vmem:[%s472] ss:$8 sm:$0x3]
      %v475 = vperm.slane %v473, 0
      %v476 = vperm.slane %v473, 1
      %v479 = vmul.f32 %v470, %v475
      %v480 = vmul.f32 %v471, %v476
      %v481 = vpack.c.bf16 %v383, %v367
      %v482 = vpack.c.bf16 %v384, %v368
      %v483 = vpack.c.bf16 %v415, %v399
      %v484 = vpack.c.bf16 %v416, %v400
      %v485 = vpack.c.bf16 %v431, %v320
      %v486 = vpack.c.bf16 %v432, %v321
      %v487 = vpack.c.bf16 %v463, %v447
      %v488 = vpack.c.bf16 %v464, %v448
      %v489 = vpack.c.bf16 %v479, %v479
      %v490 = vpack.c.bf16 %v480, %v480
      %v491 = vld [vmem:[%s2] sm:$0xf]
      %v492 = vld [vmem:[%s2 + $0x4] sm:$0xf]
      %v495 = vunpack.c.l.b16 %v491
      %v496 = vunpack.c.l.b16 %v492
      %v497 = vpack.c.b16 %v496, %v495
      %vm498 = vcmask 588800
      %v500 = vsel %vm498, %v497, 0
      %vm502 = vcmask 1043456
      %v504 = vsel %vm502, %v489, 0
      %v507 = vsel %vm502, %v490, 0
      %509 = vmatpush.bf16.msra.mxu0 0
      %510 = vmatpush.bf16.msra.mxu0 0
      %511 = vmatpush.bf16.msra.mxu0 0
      %512 = vmatpush.bf16.msra.mxu0 %v504
      %513 = vmatpush.bf16.msra.mxu0 %v487
      %514 = vmatpush.bf16.msra.mxu0 %v485
      %515 = vmatpush.bf16.msra.mxu0 %v483
      %516 = vmatpush.bf16.msra.mxu0 %v481
      %517 = vmatmul.bf16.gmra.mxu0 %v500
      %v518 = vpop.f32.mrf.mxu0
      %v519 = vadd.f32 0.0, %v518
      %v520 = vpop.f32.mrf.mxu0
      %v521 = vadd.f32 0.0, %v520
      %522 = vdwg.mxu0
      %523 = vmatpush.bf16.msra.mxu0 0
      %524 = vmatpush.bf16.msra.mxu0 0
      %525 = vmatpush.bf16.msra.mxu0 0
      %526 = vmatpush.bf16.msra.mxu0 %v507
      %527 = vmatpush.bf16.msra.mxu0 %v488
      %528 = vmatpush.bf16.msra.mxu0 %v486
      %529 = vmatpush.bf16.msra.mxu0 %v484
      %530 = vmatpush.bf16.msra.mxu0 %v482
      %531 = vmatmul.bf16.gmra.mxu0 %v500
      %v532 = vpop.f32.mrf.mxu0
      %v533 = vadd.f32 0.0, %v532
      %v534 = vpop.f32.mrf.mxu0
      %v535 = vadd.f32 0.0, %v534
      %536 = vdwg.mxu0
      %v537 = vld [vmem:[%s5] sm:$0xff]
      %539 = vset.pattern.permute.xlu0 0
      %540 = vperm.xlu0 %539, %v537
      %v541 = vpop.permute.xlu0 %540
      %v543 = vadd.f32 %v519, %v541
      %v544 = vadd.f32 %v533, %v541
      %v545 = vld [vmem:[%s5 + $0x8] sm:$0xff]
      %547 = vset.pattern.permute.xlu0 0
      %548 = vperm.xlu0 %547, %v545
      %v549 = vpop.permute.xlu0 %548
      %v551 = vadd.f32 %v521, %v549
      %v552 = vadd.f32 %v535, %v549
      %553 = vrot.lane.b32.xlu0 %v551, 17
      %v554 = vpop.permute.xlu0 %553
      %555 = vrot.lane.b32.xlu0 %v552, 17
      %v556 = vpop.permute.xlu0 %555
      %v557 = vsel %vm358, %v554, %v556
      %v558 = vsel %vm358, %v556, %v554
      %v559 = vmul.f32 %v558, %v363
      %v560 = vmul.f32 %v557, %v364
      %561 = vrot.lane.b32.xlu0 %v551, 16
      %v562 = vpop.permute.xlu0 %561
      %563 = vrot.lane.b32.xlu0 %v552, 16
      %v564 = vpop.permute.xlu0 %563
      %v565 = vsel %vm373, %v562, %v564
      %v566 = vsel %vm373, %v564, %v562
      %v567 = vmul.f32 %v566, %v379
      %v568 = vmul.f32 %v565, %v380
      %569 = vrot.lane.b32.xlu0 %v551, 15
      %v570 = vpop.permute.xlu0 %569
      %571 = vrot.lane.b32.xlu0 %v552, 15
      %v572 = vpop.permute.xlu0 %571
      %v573 = vsel %vm389, %v570, %v572
      %v574 = vsel %vm389, %v572, %v570
      %v575 = vmul.f32 %v574, %v395
      %v576 = vmul.f32 %v573, %v396
      %577 = vrot.lane.b32.xlu0 %v551, 1
      %v578 = vpop.permute.xlu0 %577
      %579 = vrot.lane.b32.xlu0 %v552, 1
      %v580 = vpop.permute.xlu0 %579
      %v581 = vsel %vm405, %v578, %v580
      %v582 = vsel %vm405, %v580, %v578
      %v583 = vmul.f32 %v582, %v411
      %v584 = vmul.f32 %v581, %v412
      %585 = vrot.lane.b32.xlu0 %v551, 127
      %v586 = vpop.permute.xlu0 %585
      %587 = vrot.lane.b32.xlu0 %v552, 127
      %v588 = vpop.permute.xlu0 %587
      %v589 = vsel %vm421, %v586, %v588
      %v590 = vsel %vm421, %v588, %v586
      %v591 = vmul.f32 %v589, %v427
      %v592 = vmul.f32 %v590, %v428
      %593 = vrot.lane.b32.xlu0 %v551, 113
      %v594 = vpop.permute.xlu0 %593
      %595 = vrot.lane.b32.xlu0 %v552, 113
      %v596 = vpop.permute.xlu0 %595
      %v597 = vsel %vm437, %v594, %v596
      %v598 = vsel %vm437, %v596, %v594
      %v599 = vmul.f32 %v597, %v443
      %v600 = vmul.f32 %v598, %v444
      %601 = vrot.lane.b32.xlu0 %v551, 112
      %v602 = vpop.permute.xlu0 %601
      %603 = vrot.lane.b32.xlu0 %v552, 112
      %v604 = vpop.permute.xlu0 %603
      %v605 = vsel %vm453, %v602, %v604
      %v606 = vsel %vm453, %v604, %v602
      %v607 = vmul.f32 %v605, %v459
      %v608 = vmul.f32 %v606, %v460
      %609 = vrot.lane.b32.xlu0 %v551, 111
      %v610 = vpop.permute.xlu0 %609
      %611 = vrot.lane.b32.xlu0 %v552, 111
      %v612 = vpop.permute.xlu0 %611
      %v613 = vsel %vm469, %v610, %v612
      %v614 = vsel %vm469, %v612, %v610
      %v615 = vmul.f32 %v613, %v475
      %v616 = vmul.f32 %v614, %v476
      %v617 = vpack.c.bf16 %v567, %v559
      %v618 = vpack.c.bf16 %v568, %v560
      %v619 = vpack.c.bf16 %v583, %v575
      %v620 = vpack.c.bf16 %v584, %v576
      %v621 = vpack.c.bf16 %v591, %v551
      %v622 = vpack.c.bf16 %v592, %v552
      %v623 = vpack.c.bf16 %v607, %v599
      %v624 = vpack.c.bf16 %v608, %v600
      %v625 = vpack.c.bf16 %v615, %v615
      %v626 = vpack.c.bf16 %v616, %v616
      %v627 = vld [vmem:[%s2 + $0x8] sm:$0xf]
      %v628 = vld [vmem:[%s5 + $0x10] sm:$0xff]
      %630 = vset.pattern.permute.xlu0 0
      %631 = vperm.xlu0 %630, %v628
      %v632 = vpop.permute.xlu0 %631
      %v635 = vsel %vm498, %v627, 0
      %v638 = vsel %vm502, %v625, 0
      %v641 = vsel %vm502, %v626, 0
      %643 = vmatpush.bf16.msra.mxu0 0
      %644 = vmatpush.bf16.msra.mxu0 0
      %645 = vmatpush.bf16.msra.mxu0 0
      %646 = vmatpush.bf16.msra.mxu0 %v638
      %647 = vmatpush.bf16.msra.mxu0 %v623
      %648 = vmatpush.bf16.msra.mxu0 %v621
      %649 = vmatpush.bf16.msra.mxu0 %v619
      %650 = vmatpush.bf16.msra.mxu0 %v617
      %651 = vmatmul.bf16.gmra.mxu0 %v635
      %v652 = vpop.f32.mrf.mxu0
      %v653 = vadd.f32 %v632, %v652
      %v654 = vpop.f32.mrf.mxu0
      %655 = vdwg.mxu0
      %656 = vmatpush.bf16.msra.mxu0 0
      %657 = vmatpush.bf16.msra.mxu0 0
      %658 = vmatpush.bf16.msra.mxu0 0
      %659 = vmatpush.bf16.msra.mxu0 %v641
      %660 = vmatpush.bf16.msra.mxu0 %v624
      %661 = vmatpush.bf16.msra.mxu0 %v622
      %662 = vmatpush.bf16.msra.mxu0 %v620
      %663 = vmatpush.bf16.msra.mxu0 %v618
      %664 = vmatmul.bf16.gmra.mxu0 %v635
      %v665 = vpop.f32.mrf.mxu0
      %v666 = vadd.f32 %v632, %v665
      %v667 = vpop.f32.mrf.mxu0
      %668 = vdwg.mxu0
      %s670 = vtos %v351
      %v671 = vstv %s670
      %v673 = vmul.f32 %v653, %v671
      %v674 = vmul.f32 %v666, %v671
      %v675 = vadd.f32 %v551, %v673
      %v676 = vadd.f32 %v552, %v674
      %v677 = vld [vmem:[%s4] sm:$0xf]
      %v678 = vpack.c.bf16 %v675, %v675
      %v679 = vpack.c.bf16 %v676, %v676
      %v680 = vld [vmem:[%s5 + $0x18] sm:$0xff]
      %682 = vset.pattern.permute.xlu0 0
      %683 = vperm.xlu0 %682, %v680
      %v684 = vpop.permute.xlu0 %683
      %vm686 = vcmask 64512
      %v688 = vsel %vm686, %v677, 0
      %v691 = vsel %vm502, %v678, 0
      %v694 = vsel %vm502, %v679, 0
      %696 = vmatpush.bf16.msra.mxu0 0
      %697 = vmatpush.bf16.msra.mxu0 0
      %698 = vmatpush.bf16.msra.mxu0 0
      %699 = vmatpush.bf16.msra.mxu0 0
      %700 = vmatpush.bf16.msra.mxu0 0
      %701 = vmatpush.bf16.msra.mxu0 0
      %702 = vmatpush.bf16.msra.mxu0 0
      %703 = vmatpush.bf16.msra.mxu0 %v691
      %704 = vmatmul.bf16.gmra.mxu0 %v688
      %v705 = vpop.f32.mrf.mxu0
      %v706 = vadd.f32 %v684, %v705
      %v707 = vpop.f32.mrf.mxu0
      %708 = vdwg.mxu0
      %709 = vmatpush.bf16.msra.mxu0 0
      %710 = vmatpush.bf16.msra.mxu0 0
      %711 = vmatpush.bf16.msra.mxu0 0
      %712 = vmatpush.bf16.msra.mxu0 0
      %713 = vmatpush.bf16.msra.mxu0 0
      %714 = vmatpush.bf16.msra.mxu0 0
      %715 = vmatpush.bf16.msra.mxu0 0
      %716 = vmatpush.bf16.msra.mxu0 %v694
      %717 = vmatmul.bf16.gmra.mxu0 %v688
      %v718 = vpop.f32.mrf.mxu0
      %v719 = vadd.f32 %v684, %v718
      %v720 = vpop.f32.mrf.mxu0
      %721 = vdwg.mxu0
      %v722 = vrot.slane %v351, 1
      %s723 = vtos %v722
      %v724 = vstv %s723
      %v726 = vmul.f32 %v706, %v724
      %v727 = vmul.f32 %v719, %v724
      %v728 = vadd.f32 %v675, %v726
      %v729 = vadd.f32 %v676, %v727
      %730 = vrot.lane.b32.xlu0 %v728, 16
      %v731 = vpop.permute.xlu0 %730
      %732 = vrot.lane.b32.xlu0 %v729, 16
      %v733 = vpop.permute.xlu0 %732
      %v734 = vsel %vm373, %v731, %v733
      %v735 = vsel %vm373, %v733, %v731
      %v736 = vmul.f32 %v735, %v379
      %v737 = vmul.f32 %v734, %v380
      %738 = vrot.lane.b32.xlu0 %v728, 112
      %v739 = vpop.permute.xlu0 %738
      %740 = vrot.lane.b32.xlu0 %v729, 112
      %v741 = vpop.permute.xlu0 %740
      %v742 = vsel %vm453, %v739, %v741
      %v743 = vsel %vm453, %v741, %v739
      %v744 = vmul.f32 %v742, %v459
      %v745 = vmul.f32 %v743, %v460
      %v746 = vpack.c.bf16 %v728, %v736
      %v747 = vpack.c.bf16 %v729, %v737
      %v748 = vpack.c.bf16 %v744, %v744
      %v749 = vpack.c.bf16 %v745, %v745
      %v750 = vld [vmem:[%s3] sm:$0xf]
      %v751 = vld [vmem:[%s5 + $0x20] sm:$0xff]
      %753 = vset.pattern.permute.xlu0 0
      %754 = vperm.xlu0 %753, %v751
      %v755 = vpop.permute.xlu0 %754
      %vm757 = vcmask 195584
      %v759 = vsel %vm757, %v750, 0
      %v762 = vsel %vm502, %v748, 0
      %v765 = vsel %vm502, %v749, 0
      %767 = vmatpush.bf16.msra.mxu0 0
      %768 = vmatpush.bf16.msra.mxu0 0
      %769 = vmatpush.bf16.msra.mxu0 0
      %770 = vmatpush.bf16.msra.mxu0 0
      %771 = vmatpush.bf16.msra.mxu0 0
      %772 = vmatpush.bf16.msra.mxu0 0
      %773 = vmatpush.bf16.msra.mxu0 %v762
      %774 = vmatpush.bf16.msra.mxu0 %v746
      %775 = vmatmul.bf16.gmra.mxu0 %v759
      %v776 = vpop.f32.mrf.mxu0
      %v777 = vadd.f32 %v755, %v776
      %v778 = vpop.f32.mrf.mxu0
      %779 = vdwg.mxu0
      %780 = vmatpush.bf16.msra.mxu0 0
      %781 = vmatpush.bf16.msra.mxu0 0
      %782 = vmatpush.bf16.msra.mxu0 0
      %783 = vmatpush.bf16.msra.mxu0 0
      %784 = vmatpush.bf16.msra.mxu0 0
      %785 = vmatpush.bf16.msra.mxu0 0
      %786 = vmatpush.bf16.msra.mxu0 %v765
      %787 = vmatpush.bf16.msra.mxu0 %v747
      %788 = vmatmul.bf16.gmra.mxu0 %v759
      %v789 = vpop.f32.mrf.mxu0
      %v790 = vadd.f32 %v755, %v789
      %v791 = vpop.f32.mrf.mxu0
      %792 = vdwg.mxu0
      %v793 = vrot.slane %v351, 2
      %s794 = vtos %v793
      %v795 = vstv %s794
      %v797 = vmul.f32 %v777, %v795
      %v798 = vmul.f32 %v790, %v795
      %v799 = vadd.f32 %v728, %v797
      %v800 = vadd.f32 %v729, %v798
      %801 = vrot.lane.b32.xlu0 %v799, 1
      %v802 = vpop.permute.xlu0 %801
      %803 = vrot.lane.b32.xlu0 %v800, 1
      %v804 = vpop.permute.xlu0 %803
      %v805 = vsel %vm405, %v802, %v804
      %v806 = vsel %vm405, %v804, %v802
      %v807 = vmul.f32 %v806, %v411
      %v808 = vmul.f32 %v805, %v412
      %809 = vrot.lane.b32.xlu0 %v799, 127
      %v810 = vpop.permute.xlu0 %809
      %811 = vrot.lane.b32.xlu0 %v800, 127
      %v812 = vpop.permute.xlu0 %811
      %v813 = vsel %vm421, %v810, %v812
      %v814 = vsel %vm421, %v812, %v810
      %v815 = vmul.f32 %v813, %v427
      %v816 = vmul.f32 %v814, %v428
      %v817 = vpack.c.bf16 %v799, %v807
      %v818 = vpack.c.bf16 %v800, %v808
      %v819 = vpack.c.bf16 %v815, %v815
      %v820 = vpack.c.bf16 %v816, %v816
      %v821 = vld [vmem:[%s3 + $0x4] sm:$0xf]
      %v822 = vld [vmem:[%s5 + $0x28] sm:$0xff]
      %824 = vset.pattern.permute.xlu0 0
      %825 = vperm.xlu0 %824, %v822
      %v826 = vpop.permute.xlu0 %825
      %v829 = vsel %vm757, %v821, 0
      %v832 = vsel %vm502, %v819, 0
      %v835 = vsel %vm502, %v820, 0
      %837 = vmatpush.bf16.msra.mxu0 0
      %838 = vmatpush.bf16.msra.mxu0 0
      %839 = vmatpush.bf16.msra.mxu0 0
      %840 = vmatpush.bf16.msra.mxu0 0
      %841 = vmatpush.bf16.msra.mxu0 0
      %842 = vmatpush.bf16.msra.mxu0 0
      %843 = vmatpush.bf16.msra.mxu0 %v832
      %844 = vmatpush.bf16.msra.mxu0 %v817
      %845 = vmatmul.bf16.gmra.mxu0 %v829
      %v846 = vpop.f32.mrf.mxu0
      %v847 = vadd.f32 %v826, %v846
      %v848 = vpop.f32.mrf.mxu0
      %849 = vdwg.mxu0
      %850 = vmatpush.bf16.msra.mxu0 0
      %851 = vmatpush.bf16.msra.mxu0 0
      %852 = vmatpush.bf16.msra.mxu0 0
      %853 = vmatpush.bf16.msra.mxu0 0
      %854 = vmatpush.bf16.msra.mxu0 0
      %855 = vmatpush.bf16.msra.mxu0 0
      %856 = vmatpush.bf16.msra.mxu0 %v835
      %857 = vmatpush.bf16.msra.mxu0 %v818
      %858 = vmatmul.bf16.gmra.mxu0 %v829
      %v859 = vpop.f32.mrf.mxu0
      %v860 = vadd.f32 %v826, %v859
      %v861 = vpop.f32.mrf.mxu0
      %862 = vdwg.mxu0
      %v863 = vrot.slane %v351, 3
      %s864 = vtos %v863
      %v865 = vstv %s864
      %v867 = vmul.f32 %v847, %v865
      %v868 = vmul.f32 %v860, %v865
      %v869 = vadd.f32 %v799, %v867
      %v870 = vadd.f32 %v800, %v868
      %871 = vst [vmem:[%s313] sm:$0xff] %v543
      %872 = vst [vmem:[%s313 + $0x8] sm:$0xff] %v544
      %873 = vst [vmem:[%s318] sm:$0xff] %v869
      %874 = vst [vmem:[%s318 + $0x8] sm:$0xff] %v870
      %p875 = scmp.lt.s32.totalorder %s20, 1
      %s876 = scalar_select %p875, %s20, 1
      %s877 = smul.addr %s876, 2
      %s878 = smul.addr %s877, 8
      %s879 = scalar_lea.vmem %s7, %s878
      %p880 = scmp.lt.s32.totalorder %s20, 1
      %s881 = scalar_select %p880, %s20, 1
      %s882 = smul.addr %s881, 2
      %s883 = smul.addr %s882, 8
      %s884 = scalar_lea.vmem %s8, %s883
      // Predicated region
      $region49: #{conv2d_lrd_dynamic_forward.1} parent=47 // pred_check
        %p885 = pneg %p190
      $region50: #{conv2d_lrd_dynamic_forward.1} parent=47 // pred_check_branch
        %887 = sbr.rel (%p885) target = $region52
      $region51: #{conv2d_lrd_dynamic_forward.1} parent=47 // pred_region
        _
      $region52: #{conv2d_lrd_dynamic_forward.1} parent=47 // pred_fallthru
        _
      // Predicated region
      $region53: #{conv2d_lrd_dynamic_forward.1} parent=47 // pred_check
        %p888 = pneg %p216
      $region54: #{conv2d_lrd_dynamic_forward.1} parent=47 // pred_check_branch
        %890 = sbr.rel (%p888) target = $region56
      $region55: #{conv2d_lrd_dynamic_forward.1} parent=47 // pred_region
        _
      $region56: #{conv2d_lrd_dynamic_forward.1} parent=47 // pred_fallthru
        _
    $region48: #{conv2d_lrd_dynamic_forward.1} parent=5 // pred_fallthru
      _
    %p891 = scmp.le.s32.totalorder 2, %s15
    // Predicated region
    $region57: #{conv2d_lrd_dynamic_forward.1} parent=5 // pred_check
      %p892 = pneg %p891
    $region58: #{conv2d_lrd_dynamic_forward.1} parent=5 // pred_check_branch
      %894 = sbr.rel (%p892) target = $region60
    $region59: #{conv2d_lrd_dynamic_forward.1} parent=5 // pred_region
      %s895 = ssub.s32 %s15, 2
      // Predicated region
      $region61: #{conv2d_lrd_dynamic_forward.1} parent=59 // pred_check
        %p896 = pneg %p196
      $region62: #{conv2d_lrd_dynamic_forward.1} parent=59 // pred_check_branch
        %898 = sbr.rel (%p896) target = $region64
      $region63: #{conv2d_lrd_dynamic_forward.1} parent=59 // pred_region
        %p899 = scmp.lt.s32.totalorder %s21, 1
        %s900 = scalar_select %p899, %s21, 1
        %s901 = smul.addr %s900, 2
        %s902 = smul.addr %s901, 8
        %s903 = scalar_lea.vmem %s7, %s902
      $region64: #{conv2d_lrd_dynamic_forward.1} parent=59 // pred_fallthru
        _
      // Predicated region
      $region65: #{conv2d_lrd_dynamic_forward.1} parent=59 // pred_check
        %p904 = pneg %p222
      $region66: #{conv2d_lrd_dynamic_forward.1} parent=59 // pred_check_branch
        %906 = sbr.rel (%p904) target = $region68
      $region67: #{conv2d_lrd_dynamic_forward.1} parent=59 // pred_region
        %p907 = scmp.lt.s32.totalorder %s21, 1
        %s908 = scalar_select %p907, %s21, 1
        %s909 = smul.addr %s908, 2
        %s910 = smul.addr %s909, 8
        %s911 = scalar_lea.vmem %s8, %s910
      $region68: #{conv2d_lrd_dynamic_forward.1} parent=59 // pred_fallthru
        _
    $region60: #{conv2d_lrd_dynamic_forward.1} parent=5 // pred_fallthru
      _
  $region6: #{conv2d_lrd_dynamic_forward.1} parent=0 // loop_footer
    %s19 = sadd.s32 1, %s15
  $region7: #{conv2d_lrd_dynamic_forward.1} parent=0 // loop_footer_branch
    %14 = sbr.rel target = $region3
  $region8: #{conv2d_lrd_dynamic_forward.1} parent=0 // loop_exit
    _

</llo_original>
